<compile_context>
chip_gen: v6e
topology: v6e:2x2x1
jax: 0.10.0
libtpu: 0.0.40
codegen_flags: <defaults>
</compile_context>

<pallas_src>
import functools
import math

import numpy as np
import jax
import jax.numpy as jnp
from jax.scipy.special import gammaln
from jax.experimental import pallas as pl
from jax.experimental.pallas import tpu as pltpu

_EPS = 1e-7
_TILE_N = 256     # batch tile on the lane axis; multiple of 128, register-friendly


def _bezier_kernel(x_ref, lw_ref, lb_ref, mt_ref, cp_ref, w_ref,
                   dp_ref, pv_ref, iv_ref, *, coefs, n_cp, n_dp, dim):
    # Shapes (Tn = batch tile on lanes):
    #   x_ref  (H, Tn)      lw_ref (DP-1, H)   lb_ref (DP-1, 1)   mt_ref (DP, DP-1)
    #   cp_ref (D*CP, Tn)   w_ref  (CP, Tn)
    #   dp_ref (D*DP, Tn)   pv_ref (DP, Tn)    iv_ref (DP, Tn)

    # --- generate_intervals: Linear -> Softmax over features -> left-pad one zero row ---
    z = jnp.dot(lw_ref[...], x_ref[...],
                preferred_element_type=jnp.float32) + lb_ref[...]        # (DP-1, Tn)
    z = z - jnp.max(z, axis=0, keepdims=True)
    e = jnp.exp(z)
    sm = e / jnp.sum(e, axis=0, keepdims=True)                           # (DP-1, Tn)

    iv_ref[0:1, :] = jnp.zeros_like(sm[0:1, :])                          # padded zero row
    iv_ref[1:n_dp, :] = sm

    # --- cumsum of the padded intervals fused into a single constant matmul; clamp [0,1] ---
    pv = jnp.clip(jnp.dot(mt_ref[...], sm, preferred_element_type=jnp.float32), 0.0, 1.0)
    pv_ref[...] = pv                                                      # (DP, Tn)

    # --- Bernstein basis via multiplicative binomial recurrence (pure VPU, no exp/log) ---
    a = pv + _EPS                 # replaces exp(pw1 * log(pv + eps))
    b = 1.0 - pv + _EPS           # replaces exp(pw2 * log(1 - pv + eps))
    bpows = [jnp.ones_like(b)]
    for _ in range(n_cp - 1):
        bpows.append(bpows[-1] * b)

    w = w_ref[...]                # (CP, Tn)
    cp = cp_ref[...]              # (D*CP, Tn), row d*CP + i  <->  control_points[:, d, i]

    den = jnp.zeros_like(pv)
    nums = [jnp.zeros_like(pv) for _ in range(dim)]
    ap = jnp.ones_like(a)                                                 # running (pv+eps)^i
    for i in range(n_cp):
        bs_i = (coefs[i] * ap) * bpows[n_cp - 1 - i]                      # (DP, Tn)
        t_i = bs_i * w[i:i + 1, :]                                        # w_i * bs_i
        den = den + t_i
        for d in range(dim):
            nums[d] = nums[d] + t_i * cp[d * n_cp + i:d * n_cp + i + 1, :]
        if i + 1 < n_cp:
            ap = ap * a

    inv_den = pl.reciprocal(den, approx=False)   # exact; shared across the D numerators
    for d in range(dim):
        dp_ref[d * n_dp:(d + 1) * n_dp, :] = nums[d] * inv_den


def bezier_layer(inp, control_points, weights, lin_w, lin_b,
                 n_control_points, n_data_points, *, tile_n_max=_TILE_N):
    N, H = inp.shape
    D = control_points.shape[1]
    CP = int(n_control_points)
    DP = int(n_data_points)

    # _check_consistency (static)
    assert control_points.shape[-1] == CP, "number of control points inconsistent"
    assert weights.shape[-1] == CP, "number of weights inconsistent"
    assert weights.shape[1] == 1, "one weight per control point expected"

    # --- batch tiling: N on the lane axis, padded up to a multiple of the tile if needed ---
    if N <= tile_n_max:
        tile_n, n_pad = N, N
    else:
        tile_n = tile_n_max
        n_pad = -(-N // tile_n) * tile_n
    pad = n_pad - N

    xT = inp.astype(jnp.float32).T                                          # (H, N)
    cpT = control_points.astype(jnp.float32).transpose(1, 2, 0).reshape(D * CP, N)
    wT = weights.astype(jnp.float32).reshape(N, CP).T                       # (CP, N)
    if pad:
        xT = jnp.pad(xT, ((0, 0), (0, pad)))
        cpT = jnp.pad(cpT, ((0, 0), (0, pad)))
        # pad weights with ones so padded (discarded) columns stay finite
        wT = jnp.concatenate([wT, jnp.ones((CP, pad), jnp.float32)], axis=1)

    lw = lin_w.astype(jnp.float32)                                          # (DP-1, H)
    lb = lin_b.astype(jnp.float32).reshape(DP - 1, 1)                       # (DP-1, 1)
    # fused ConstantPad1d([1,0]) + cumsum: cums[j] = sum_{i < j} softmax[i]
    mt = jnp.tril(jnp.ones((DP, DP - 1), jnp.float32), -1)                  # (DP, DP-1)

    # binomial coefficients with the same eps perturbations as the PyTorch lgamma path,
    # baked in as compile-time Python constants (no coefficient tensors, no in-kernel lgamma)
    coefs = tuple(
        math.exp(math.lgamma(CP + _EPS) - math.lgamma(i + 1 + _EPS)
                 - math.lgamma(CP - 1 - i + 1 + _EPS))
        for i in range(CP))

    kernel = functools.partial(_bezier_kernel, coefs=coefs, n_cp=CP, n_dp=DP, dim=D)

    def batch_spec(rows):
        return pl.BlockSpec((rows, tile_n), lambda i: (0, i))

    def const_spec(shape):
        return pl.BlockSpec(shape, lambda i: (0, 0))   # resident across grid steps

    dp_t, pv_t, iv_t = pl.pallas_call(
        kernel,
        out_shape=(jax.ShapeDtypeStruct((D * DP, n_pad), jnp.float32),
                   jax.ShapeDtypeStruct((DP, n_pad), jnp.float32),
                   jax.ShapeDtypeStruct((DP, n_pad), jnp.float32)),
        grid_spec=pltpu.PrefetchScalarGridSpec(
            num_scalar_prefetch=0,
            grid=(n_pad // tile_n,),
            in_specs=[batch_spec(H),                 # xT
                      const_spec((DP - 1, H)),       # linear weight
                      const_spec((DP - 1, 1)),       # linear bias
                      const_spec((DP, DP - 1)),      # fused pad+cumsum matrix
                      batch_spec(D * CP),            # control points (flattened, transposed)
                      batch_spec(CP)],               # weights (transposed)
            out_specs=(batch_spec(D * DP), batch_spec(DP), batch_spec(DP)),
        ),
        compiler_params=pltpu.CompilerParams(
            dimension_semantics=("parallel",),       # shard batch over v7x's 2 TCs
            vmem_limit_bytes=32 * 1024 * 1024),
    )(xT, lw, lb, mt, cpT, wT)

    # back to the PyTorch output layout
    dp = dp_t[:, :N].reshape(D, DP, N).transpose(2, 0, 1)                   # (N, D, DP)
    pv = pv_t[:, :N].T[:, None, :]                                          # (N, 1, DP)
    intvls = iv_t[:, :N].T                                                  # (N, DP)
    return dp, pv, intvls


def bezier_layer_ref(inp, control_points, weights, lin_w, lin_b, CP, DP):
    """Pure-JAX reference replicating the PyTorch forward."""
    z = inp @ lin_w.T + lin_b
    sm = jax.nn.softmax(z, axis=1)
    intvls = jnp.pad(sm, ((0, 0), (1, 0)))
    pv = jnp.clip(jnp.cumsum(intvls, -1), 0.0, 1.0)[:, None, :]
    pw1 = jnp.arange(0.0, CP).reshape(1, CP, 1)
    pw2 = pw1[:, ::-1, :]
    lbs = (pw1 * jnp.log(pv + _EPS) + pw2 * jnp.log(1 - pv + _EPS)
           + gammaln(jnp.float32(CP) + _EPS)
           - gammaln(pw1 + 1 + _EPS) - gammaln(pw2 + 1 + _EPS))
    bs = jnp.exp(lbs)
    dp = jnp.einsum('ndc,ncp->ndp', control_points * weights, bs) / \
         jnp.einsum('nqc,ncp->nqp', weights, bs)
    return dp, pv, intvls


if __name__ == "__main__":
    N, H, D = 2, 32, 2
    CP, DP = 8, 16

    key = jax.random.PRNGKey(0)
    k1, k2, k3, k4, k5 = jax.random.split(key, 5)

    x = jax.random.normal(k1, (N, H), jnp.float32)
    cp = jax.random.normal(k2, (N, D, CP), jnp.float32)
    w = jax.nn.sigmoid(jax.random.normal(k3, (N, 1, CP), jnp.float32)) + 0.1  # positive

    bound = 1.0 / np.sqrt(H)
    lin_w = jax.random.uniform(k4, (DP - 1, H), jnp.float32, -bound, bound)
    lin_b = jax.random.uniform(k5, (DP - 1,), jnp.float32, -bound, bound)

    dp_out, pv_out, intvls_out = jax.block_until_ready(
        bezier_layer(x, cp, w, lin_w, lin_b, CP, DP))

    dp_r, pv_r, intvls_r = bezier_layer_ref(x, cp, w, lin_w, lin_b, CP, DP)
    np.testing.assert_allclose(np.asarray(dp_out), np.asarray(dp_r), rtol=1e-5, atol=1e-5)
    np.testing.assert_allclose(np.asarray(pv_out), np.asarray(pv_r), rtol=1e-5, atol=1e-5)
    np.testing.assert_allclose(np.asarray(intvls_out), np.asarray(intvls_r), rtol=1e-5, atol=1e-5)

    print("KERNEL_OK")
</pallas_src>

<mosaic_0001>
module attributes {stable_mosaic.version = 11 : i64} {
  func.func @_bezier_kernel(%arg0: i32, %arg1: memref<32x2xf32, #tpu.memory_space<vmem>>, %arg2: memref<15x32xf32, #tpu.memory_space<vmem>>, %arg3: memref<15x1xf32, #tpu.memory_space<vmem>>, %arg4: memref<16x15xf32, #tpu.memory_space<vmem>>, %arg5: memref<16x2xf32, #tpu.memory_space<vmem>>, %arg6: memref<8x2xf32, #tpu.memory_space<vmem>>, %arg7: memref<32x2xf32, #tpu.memory_space<vmem>>, %arg8: memref<16x2xf32, #tpu.memory_space<vmem>>, %arg9: memref<16x2xf32, #tpu.memory_space<vmem>>) attributes {dimension_semantics = [#tpu.dimension_semantics<parallel>], iteration_bounds = array<i64: 1>, scalar_prefetch = 0 : i64, scratch_operands = 0 : i64, tpu.core_type = #tpu.core_type<tc>, window_params = [{transform_indices = @transform_0, window_bounds = array<i64: 32, 2>}, {pipeline_mode = #tpu.pipeline_mode<synchronous>, transform_indices = @transform_1, window_bounds = array<i64: 15, 32>}, {pipeline_mode = #tpu.pipeline_mode<synchronous>, transform_indices = @transform_2, window_bounds = array<i64: 15, 1>}, {pipeline_mode = #tpu.pipeline_mode<synchronous>, transform_indices = @transform_3, window_bounds = array<i64: 16, 15>}, {transform_indices = @transform_4, window_bounds = array<i64: 16, 2>}, {transform_indices = @transform_5, window_bounds = array<i64: 8, 2>}, {transform_indices = @transform_6, window_bounds = array<i64: 32, 2>}, {transform_indices = @transform_7, window_bounds = array<i64: 16, 2>}, {transform_indices = @transform_8, window_bounds = array<i64: 16, 2>}]} {
    %c0 = arith.constant 0 : index
    %c0_0 = arith.constant 0 : index
    %0 = vector.load %arg2[%c0, %c0_0] : memref<15x32xf32, #tpu.memory_space<vmem>>, vector<15x32xf32>
    %c0_1 = arith.constant 0 : index
    %c0_2 = arith.constant 0 : index
    %1 = vector.load %arg1[%c0_1, %c0_2] : memref<32x2xf32, #tpu.memory_space<vmem>>, vector<32x2xf32>
    %cst = arith.constant dense<0.000000e+00> : vector<15x2xf32>
    %2 = tpu.matmul %0, %1, %cst {dimension_numbers = #tpu.dot_dimension_numbers<[1], [0], [0], [1], [0, 0, 1, 1], [], []>} : vector<15x32xf32>, vector<32x2xf32>, vector<15x2xf32> -> vector<15x2xf32>
    %c0_3 = arith.constant 0 : index
    %c0_4 = arith.constant 0 : index
    %3 = vector.load %arg3[%c0_3, %c0_4] : memref<15x1xf32, #tpu.memory_space<vmem>>, vector<15x1xf32>
    %4 = vector.broadcast %3 : vector<15x1xf32> to vector<15x2xf32>
    %5 = arith.addf %2, %4 : vector<15x2xf32>
    %cst_5 = arith.constant dense<0xFF800000> : vector<2xf32>
    %6 = vector.multi_reduction <maximumf>, %5, %cst_5 [0] : vector<15x2xf32> to vector<2xf32>
    %7 = vector.shape_cast %6 : vector<2xf32> to vector<1x2xf32>
    %8 = vector.broadcast %7 : vector<1x2xf32> to vector<15x2xf32>
    %9 = arith.subf %5, %8 : vector<15x2xf32>
    %10 = math.exp %9 : vector<15x2xf32>
    %cst_6 = arith.constant dense<0.000000e+00> : vector<2xf32>
    %11 = vector.multi_reduction <add>, %10, %cst_6 [0] : vector<15x2xf32> to vector<2xf32>
    %12 = vector.shape_cast %11 : vector<2xf32> to vector<1x2xf32>
    %13 = vector.broadcast %12 : vector<1x2xf32> to vector<15x2xf32>
    %14 = arith.divf %10, %13 : vector<15x2xf32>
    %cst_7 = arith.constant 0.000000e+00 : f32
    %15 = vector.broadcast %cst_7 : f32 to vector<1x2xf32>
    %c0_8 = arith.constant 0 : index
    %c0_9 = arith.constant 0 : index
    %16 = vector.load %arg9[%c0_8, %c0_9] : memref<16x2xf32, #tpu.memory_space<vmem>>, vector<1x2xf32>
    tpu.vector_store %arg9[%c0_8, %c0_9], %15 {strides = array<i32>} : memref<16x2xf32, #tpu.memory_space<vmem>>, vector<1x2xf32>,
    %c1 = arith.constant 1 : index
    %c0_10 = arith.constant 0 : index
    %17 = vector.load %arg9[%c1, %c0_10] : memref<16x2xf32, #tpu.memory_space<vmem>>, vector<15x2xf32>
    tpu.vector_store %arg9[%c1, %c0_10], %14 {strides = array<i32>} : memref<16x2xf32, #tpu.memory_space<vmem>>, vector<15x2xf32>,
    %c0_11 = arith.constant 0 : index
    %c0_12 = arith.constant 0 : index
    %18 = vector.load %arg4[%c0_11, %c0_12] : memref<16x15xf32, #tpu.memory_space<vmem>>, vector<16x15xf32>
    %cst_13 = arith.constant dense<0.000000e+00> : vector<16x2xf32>
    %19 = tpu.matmul %18, %14, %cst_13 {dimension_numbers = #tpu.dot_dimension_numbers<[1], [0], [0], [1], [0, 0, 1, 1], [], []>} : vector<16x15xf32>, vector<15x2xf32>, vector<16x2xf32> -> vector<16x2xf32>
    %cst_14 = arith.constant 0.000000e+00 : f32
    %cst_15 = arith.constant 1.000000e+00 : f32
    %20 = vector.broadcast %cst_14 : f32 to vector<16x2xf32>
    %21 = arith.maximumf %20, %19 : vector<16x2xf32>
    %22 = vector.broadcast %cst_15 : f32 to vector<16x2xf32>
    %23 = arith.minimumf %22, %21 : vector<16x2xf32>
    %c0_16 = arith.constant 0 : index
    %c0_17 = arith.constant 0 : index
    %24 = vector.load %arg8[%c0_16, %c0_17] : memref<16x2xf32, #tpu.memory_space<vmem>>, vector<16x2xf32>
    tpu.vector_store %arg8[%c0_16, %c0_17], %23 {strides = array<i32>} : memref<16x2xf32, #tpu.memory_space<vmem>>, vector<16x2xf32>,
    %cst_18 = arith.constant 1.000000e-07 : f32
    %25 = vector.broadcast %cst_18 : f32 to vector<16x2xf32>
    %26 = arith.addf %23, %25 : vector<16x2xf32>
    %cst_19 = arith.constant 1.000000e+00 : f32
    %27 = vector.broadcast %cst_19 : f32 to vector<16x2xf32>
    %28 = arith.subf %27, %23 : vector<16x2xf32>
    %cst_20 = arith.constant 1.000000e-07 : f32
    %29 = vector.broadcast %cst_20 : f32 to vector<16x2xf32>
    %30 = arith.addf %28, %29 : vector<16x2xf32>
    %cst_21 = arith.constant 1.000000e+00 : f32
    %31 = vector.broadcast %cst_21 : f32 to vector<16x2xf32>
    %32 = arith.mulf %31, %30 : vector<16x2xf32>
    %33 = arith.mulf %32, %30 : vector<16x2xf32>
    %34 = arith.mulf %33, %30 : vector<16x2xf32>
    %35 = arith.mulf %34, %30 : vector<16x2xf32>
    %36 = arith.mulf %35, %30 : vector<16x2xf32>
    %37 = arith.mulf %36, %30 : vector<16x2xf32>
    %38 = arith.mulf %37, %30 : vector<16x2xf32>
    %c0_22 = arith.constant 0 : index
    %c0_23 = arith.constant 0 : index
    %39 = vector.load %arg6[%c0_22, %c0_23] : memref<8x2xf32, #tpu.memory_space<vmem>>, vector<8x2xf32>
    %c0_24 = arith.constant 0 : index
    %c0_25 = arith.constant 0 : index
    %40 = vector.load %arg5[%c0_24, %c0_25] : memref<16x2xf32, #tpu.memory_space<vmem>>, vector<16x2xf32>
    %cst_26 = arith.constant 0.000000e+00 : f32
    %41 = vector.broadcast %cst_26 : f32 to vector<16x2xf32>
    %cst_27 = arith.constant 0.000000e+00 : f32
    %42 = vector.broadcast %cst_27 : f32 to vector<16x2xf32>
    %cst_28 = arith.constant 0.000000e+00 : f32
    %43 = vector.broadcast %cst_28 : f32 to vector<16x2xf32>
    %cst_29 = arith.constant 1.000000e+00 : f32
    %44 = vector.broadcast %cst_29 : f32 to vector<16x2xf32>
    %cst_30 = arith.constant 1.000000e+00 : f32
    %45 = vector.broadcast %cst_30 : f32 to vector<16x2xf32>
    %46 = arith.mulf %45, %44 : vector<16x2xf32>
    %47 = arith.mulf %46, %38 : vector<16x2xf32>
    %48 = vector.extract_strided_slice %39 {offsets = [0, 0], sizes = [1, 2], strides = [1, 1]} : vector<8x2xf32> to vector<1x2xf32>
    %49 = vector.broadcast %48 : vector<1x2xf32> to vector<16x2xf32>
    %50 = arith.mulf %47, %49 : vector<16x2xf32>
    %51 = arith.addf %41, %50 : vector<16x2xf32>
    %52 = vector.extract_strided_slice %40 {offsets = [0, 0], sizes = [1, 2], strides = [1, 1]} : vector<16x2xf32> to vector<1x2xf32>
    %53 = vector.broadcast %52 : vector<1x2xf32> to vector<16x2xf32>
    %54 = arith.mulf %50, %53 : vector<16x2xf32>
    %55 = arith.addf %42, %54 : vector<16x2xf32>
    %56 = vector.extract_strided_slice %40 {offsets = [8, 0], sizes = [1, 2], strides = [1, 1]} : vector<16x2xf32> to vector<1x2xf32>
    %57 = vector.broadcast %56 : vector<1x2xf32> to vector<16x2xf32>
    %58 = arith.mulf %50, %57 : vector<16x2xf32>
    %59 = arith.addf %43, %58 : vector<16x2xf32>
    %60 = arith.mulf %44, %26 : vector<16x2xf32>
    %cst_31 = arith.constant 7.000000e+00 : f32
    %61 = vector.broadcast %cst_31 : f32 to vector<16x2xf32>
    %62 = arith.mulf %61, %60 : vector<16x2xf32>
    %63 = arith.mulf %62, %37 : vector<16x2xf32>
    %64 = vector.extract_strided_slice %39 {offsets = [1, 0], sizes = [1, 2], strides = [1, 1]} : vector<8x2xf32> to vector<1x2xf32>
    %65 = vector.broadcast %64 : vector<1x2xf32> to vector<16x2xf32>
    %66 = arith.mulf %63, %65 : vector<16x2xf32>
    %67 = arith.addf %51, %66 : vector<16x2xf32>
    %68 = vector.extract_strided_slice %40 {offsets = [1, 0], sizes = [1, 2], strides = [1, 1]} : vector<16x2xf32> to vector<1x2xf32>
    %69 = vector.broadcast %68 : vector<1x2xf32> to vector<16x2xf32>
    %70 = arith.mulf %66, %69 : vector<16x2xf32>
    %71 = arith.addf %55, %70 : vector<16x2xf32>
    %72 = vector.extract_strided_slice %40 {offsets = [9, 0], sizes = [1, 2], strides = [1, 1]} : vector<16x2xf32> to vector<1x2xf32>
    %73 = vector.broadcast %72 : vector<1x2xf32> to vector<16x2xf32>
    %74 = arith.mulf %66, %73 : vector<16x2xf32>
    %75 = arith.addf %59, %74 : vector<16x2xf32>
    %76 = arith.mulf %60, %26 : vector<16x2xf32>
    %cst_32 = arith.constant 20.9999981 : f32
    %77 = vector.broadcast %cst_32 : f32 to vector<16x2xf32>
    %78 = arith.mulf %77, %76 : vector<16x2xf32>
    %79 = arith.mulf %78, %36 : vector<16x2xf32>
    %80 = vector.extract_strided_slice %39 {offsets = [2, 0], sizes = [1, 2], strides = [1, 1]} : vector<8x2xf32> to vector<1x2xf32>
    %81 = vector.broadcast %80 : vector<1x2xf32> to vector<16x2xf32>
    %82 = arith.mulf %79, %81 : vector<16x2xf32>
    %83 = arith.addf %67, %82 : vector<16x2xf32>
    %84 = vector.extract_strided_slice %40 {offsets = [2, 0], sizes = [1, 2], strides = [1, 1]} : vector<16x2xf32> to vector<1x2xf32>
    %85 = vector.broadcast %84 : vector<1x2xf32> to vector<16x2xf32>
    %86 = arith.mulf %82, %85 : vector<16x2xf32>
    %87 = arith.addf %71, %86 : vector<16x2xf32>
    %88 = vector.extract_strided_slice %40 {offsets = [10, 0], sizes = [1, 2], strides = [1, 1]} : vector<16x2xf32> to vector<1x2xf32>
    %89 = vector.broadcast %88 : vector<1x2xf32> to vector<16x2xf32>
    %90 = arith.mulf %82, %89 : vector<16x2xf32>
    %91 = arith.addf %75, %90 : vector<16x2xf32>
    %92 = arith.mulf %76, %26 : vector<16x2xf32>
    %cst_33 = arith.constant 34.9999962 : f32
    %93 = vector.broadcast %cst_33 : f32 to vector<16x2xf32>
    %94 = arith.mulf %93, %92 : vector<16x2xf32>
    %95 = arith.mulf %94, %35 : vector<16x2xf32>
    %96 = vector.extract_strided_slice %39 {offsets = [3, 0], sizes = [1, 2], strides = [1, 1]} : vector<8x2xf32> to vector<1x2xf32>
    %97 = vector.broadcast %96 : vector<1x2xf32> to vector<16x2xf32>
    %98 = arith.mulf %95, %97 : vector<16x2xf32>
    %99 = arith.addf %83, %98 : vector<16x2xf32>
    %100 = vector.extract_strided_slice %40 {offsets = [3, 0], sizes = [1, 2], strides = [1, 1]} : vector<16x2xf32> to vector<1x2xf32>
    %101 = vector.broadcast %100 : vector<1x2xf32> to vector<16x2xf32>
    %102 = arith.mulf %98, %101 : vector<16x2xf32>
    %103 = arith.addf %87, %102 : vector<16x2xf32>
    %104 = vector.extract_strided_slice %40 {offsets = [11, 0], sizes = [1, 2], strides = [1, 1]} : vector<16x2xf32> to vector<1x2xf32>
    %105 = vector.broadcast %104 : vector<1x2xf32> to vector<16x2xf32>
    %106 = arith.mulf %98, %105 : vector<16x2xf32>
    %107 = arith.addf %91, %106 : vector<16x2xf32>
    %108 = arith.mulf %92, %26 : vector<16x2xf32>
    %cst_34 = arith.constant 34.9999962 : f32
    %109 = vector.broadcast %cst_34 : f32 to vector<16x2xf32>
    %110 = arith.mulf %109, %108 : vector<16x2xf32>
    %111 = arith.mulf %110, %34 : vector<16x2xf32>
    %112 = vector.extract_strided_slice %39 {offsets = [4, 0], sizes = [1, 2], strides = [1, 1]} : vector<8x2xf32> to vector<1x2xf32>
    %113 = vector.broadcast %112 : vector<1x2xf32> to vector<16x2xf32>
    %114 = arith.mulf %111, %113 : vector<16x2xf32>
    %115 = arith.addf %99, %114 : vector<16x2xf32>
    %116 = vector.extract_strided_slice %40 {offsets = [4, 0], sizes = [1, 2], strides = [1, 1]} : vector<16x2xf32> to vector<1x2xf32>
    %117 = vector.broadcast %116 : vector<1x2xf32> to vector<16x2xf32>
    %118 = arith.mulf %114, %117 : vector<16x2xf32>
    %119 = arith.addf %103, %118 : vector<16x2xf32>
    %120 = vector.extract_strided_slice %40 {offsets = [12, 0], sizes = [1, 2], strides = [1, 1]} : vector<16x2xf32> to vector<1x2xf32>
    %121 = vector.broadcast %120 : vector<1x2xf32> to vector<16x2xf32>
    %122 = arith.mulf %114, %121 : vector<16x2xf32>
    %123 = arith.addf %107, %122 : vector<16x2xf32>
    %124 = arith.mulf %108, %26 : vector<16x2xf32>
    %cst_35 = arith.constant 20.9999981 : f32
    %125 = vector.broadcast %cst_35 : f32 to vector<16x2xf32>
    %126 = arith.mulf %125, %124 : vector<16x2xf32>
    %127 = arith.mulf %126, %33 : vector<16x2xf32>
    %128 = vector.extract_strided_slice %39 {offsets = [5, 0], sizes = [1, 2], strides = [1, 1]} : vector<8x2xf32> to vector<1x2xf32>
    %129 = vector.broadcast %128 : vector<1x2xf32> to vector<16x2xf32>
    %130 = arith.mulf %127, %129 : vector<16x2xf32>
    %131 = arith.addf %115, %130 : vector<16x2xf32>
    %132 = vector.extract_strided_slice %40 {offsets = [5, 0], sizes = [1, 2], strides = [1, 1]} : vector<16x2xf32> to vector<1x2xf32>
    %133 = vector.broadcast %132 : vector<1x2xf32> to vector<16x2xf32>
    %134 = arith.mulf %130, %133 : vector<16x2xf32>
    %135 = arith.addf %119, %134 : vector<16x2xf32>
    %136 = vector.extract_strided_slice %40 {offsets = [13, 0], sizes = [1, 2], strides = [1, 1]} : vector<16x2xf32> to vector<1x2xf32>
    %137 = vector.broadcast %136 : vector<1x2xf32> to vector<16x2xf32>
    %138 = arith.mulf %130, %137 : vector<16x2xf32>
    %139 = arith.addf %123, %138 : vector<16x2xf32>
    %140 = arith.mulf %124, %26 : vector<16x2xf32>
    %cst_36 = arith.constant 7.000000e+00 : f32
    %141 = vector.broadcast %cst_36 : f32 to vector<16x2xf32>
    %142 = arith.mulf %141, %140 : vector<16x2xf32>
    %143 = arith.mulf %142, %32 : vector<16x2xf32>
    %144 = vector.extract_strided_slice %39 {offsets = [6, 0], sizes = [1, 2], strides = [1, 1]} : vector<8x2xf32> to vector<1x2xf32>
    %145 = vector.broadcast %144 : vector<1x2xf32> to vector<16x2xf32>
    %146 = arith.mulf %143, %145 : vector<16x2xf32>
    %147 = arith.addf %131, %146 : vector<16x2xf32>
    %148 = vector.extract_strided_slice %40 {offsets = [6, 0], sizes = [1, 2], strides = [1, 1]} : vector<16x2xf32> to vector<1x2xf32>
    %149 = vector.broadcast %148 : vector<1x2xf32> to vector<16x2xf32>
    %150 = arith.mulf %146, %149 : vector<16x2xf32>
    %151 = arith.addf %135, %150 : vector<16x2xf32>
    %152 = vector.extract_strided_slice %40 {offsets = [14, 0], sizes = [1, 2], strides = [1, 1]} : vector<16x2xf32> to vector<1x2xf32>
    %153 = vector.broadcast %152 : vector<1x2xf32> to vector<16x2xf32>
    %154 = arith.mulf %146, %153 : vector<16x2xf32>
    %155 = arith.addf %139, %154 : vector<16x2xf32>
    %156 = arith.mulf %140, %26 : vector<16x2xf32>
    %cst_37 = arith.constant 1.000000e+00 : f32
    %157 = vector.broadcast %cst_37 : f32 to vector<16x2xf32>
    %158 = arith.mulf %157, %156 : vector<16x2xf32>
    %159 = arith.mulf %158, %31 : vector<16x2xf32>
    %160 = vector.extract_strided_slice %39 {offsets = [7, 0], sizes = [1, 2], strides = [1, 1]} : vector<8x2xf32> to vector<1x2xf32>
    %161 = vector.broadcast %160 : vector<1x2xf32> to vector<16x2xf32>
    %162 = arith.mulf %159, %161 : vector<16x2xf32>
    %163 = arith.addf %147, %162 : vector<16x2xf32>
    %164 = vector.extract_strided_slice %40 {offsets = [7, 0], sizes = [1, 2], strides = [1, 1]} : vector<16x2xf32> to vector<1x2xf32>
    %165 = vector.broadcast %164 : vector<1x2xf32> to vector<16x2xf32>
    %166 = arith.mulf %162, %165 : vector<16x2xf32>
    %167 = arith.addf %151, %166 : vector<16x2xf32>
    %168 = vector.extract_strided_slice %40 {offsets = [15, 0], sizes = [1, 2], strides = [1, 1]} : vector<16x2xf32> to vector<1x2xf32>
    %169 = vector.broadcast %168 : vector<1x2xf32> to vector<16x2xf32>
    %170 = arith.mulf %162, %169 : vector<16x2xf32>
    %171 = arith.addf %155, %170 : vector<16x2xf32>
    %172 = tpu.reciprocal %163 : vector<16x2xf32> -> vector<16x2xf32>
    %173 = arith.mulf %167, %172 : vector<16x2xf32>
    %c0_38 = arith.constant 0 : index
    %c0_39 = arith.constant 0 : index
    %174 = vector.load %arg7[%c0_38, %c0_39] : memref<32x2xf32, #tpu.memory_space<vmem>>, vector<16x2xf32>
    tpu.vector_store %arg7[%c0_38, %c0_39], %173 {strides = array<i32>} : memref<32x2xf32, #tpu.memory_space<vmem>>, vector<16x2xf32>,
    %175 = arith.mulf %171, %172 : vector<16x2xf32>
    %c16 = arith.constant 16 : index
    %c0_40 = arith.constant 0 : index
    %176 = vector.load %arg7[%c16, %c0_40] : memref<32x2xf32, #tpu.memory_space<vmem>>, vector<16x2xf32>
    tpu.vector_store %arg7[%c16, %c0_40], %175 {strides = array<i32>} : memref<32x2xf32, #tpu.memory_space<vmem>>, vector<16x2xf32>,
    return
  }
  func.func @transform_0(%arg0: i32) -> (i32, i32) {
    %c0_i32 = arith.constant 0 : i32
    %c0_i32_0 = arith.constant 0 : i32
    return %c0_i32, %arg0 : i32, i32
  }
  func.func @transform_1(%arg0: i32) -> (i32, i32) {
    %c0_i32 = arith.constant 0 : i32
    %c0_i32_0 = arith.constant 0 : i32
    %c0_i32_1 = arith.constant 0 : i32
    return %c0_i32, %c0_i32_0 : i32, i32
  }
  func.func @transform_2(%arg0: i32) -> (i32, i32) {
    %c0_i32 = arith.constant 0 : i32
    %c0_i32_0 = arith.constant 0 : i32
    %c0_i32_1 = arith.constant 0 : i32
    return %c0_i32, %c0_i32_0 : i32, i32
  }
  func.func @transform_3(%arg0: i32) -> (i32, i32) {
    %c0_i32 = arith.constant 0 : i32
    %c0_i32_0 = arith.constant 0 : i32
    %c0_i32_1 = arith.constant 0 : i32
    return %c0_i32, %c0_i32_0 : i32, i32
  }
  func.func @transform_4(%arg0: i32) -> (i32, i32) {
    %c0_i32 = arith.constant 0 : i32
    %c0_i32_0 = arith.constant 0 : i32
    return %c0_i32, %arg0 : i32, i32
  }
  func.func @transform_5(%arg0: i32) -> (i32, i32) {
    %c0_i32 = arith.constant 0 : i32
    %c0_i32_0 = arith.constant 0 : i32
    return %c0_i32, %arg0 : i32, i32
  }
  func.func @transform_6(%arg0: i32) -> (i32, i32) {
    %c0_i32 = arith.constant 0 : i32
    %c0_i32_0 = arith.constant 0 : i32
    return %c0_i32, %arg0 : i32, i32
  }
  func.func @transform_7(%arg0: i32) -> (i32, i32) {
    %c0_i32 = arith.constant 0 : i32
    %c0_i32_0 = arith.constant 0 : i32
    return %c0_i32, %arg0 : i32, i32
  }
  func.func @transform_8(%arg0: i32) -> (i32, i32) {
    %c0_i32 = arith.constant 0 : i32
    %c0_i32_0 = arith.constant 0 : i32
    return %c0_i32, %arg0 : i32, i32
  }
}

</mosaic_0001>

<llo_original>
// kernel: tpu_custom_call.1
$region0: #{tpu_custom_call.1}
  #allocation0 [shape = 'u32[]', space=smem, size = 0x4, offset = 0x4, fixed_abs, tag = 'smem constant byte address 0x4 - core index']
  #allocation1 [shape = 'u32[144,128]{1,0:T(1,128)}', space=vmem, size = 0x12000, scoped, tag = 'internal scratch']
  %s0 = inlined_call_operand.vmem [shape: f32[32,2], index: 0, kind: input, shape index: {}]
  %s1 = inlined_call_operand.vmem [shape: f32[15,32], index: 1, kind: input, shape index: {}]
  %s2 = inlined_call_operand.vmem [shape: f32[15,1], index: 2, kind: input, shape index: {}]
  %s3 = inlined_call_operand.vmem [shape: f32[16,15], index: 3, kind: input, shape index: {}]
  %s4 = inlined_call_operand.vmem [shape: f32[16,2], index: 4, kind: input, shape index: {}]
  %s5 = inlined_call_operand.vmem [shape: f32[8,2], index: 5, kind: input, shape index: {}]
  %s6 = inlined_call_operand.vmem [shape: f32[32,2], index: 6, kind: output, shape index: {0}]
  %s7 = inlined_call_operand.vmem [shape: f32[16,2], index: 7, kind: output, shape index: {1}]
  %s8 = inlined_call_operand.vmem [shape: f32[16,2], index: 8, kind: output, shape index: {2}]
  %9 = xla_tuple %s6, %s7, %s8
  %s10 = sld [smem:[#allocation0]]
  $region50: #{tpu_custom_call.1} parent=0
    _
  %s12 = ssub.s32 1, %s10
  %s13 = scalar_select 0, %s12, %s10
  // Predicated region
  $region2: #{tpu_custom_call.1} parent=0 // pred_check
    _
  $region3: #{tpu_custom_call.1} parent=0 // pred_check_branch
    %15 = sbr.rel (0) target = $region5
  $region4: #{tpu_custom_call.1} parent=0 // pred_region
    _
  $region5: #{tpu_custom_call.1} parent=0 // pred_fallthru
    _
  // Predicated region
  $region6: #{tpu_custom_call.1} parent=0 // pred_check
    _
  $region7: #{tpu_custom_call.1} parent=0 // pred_check_branch
    %17 = sbr.rel (0) target = $region9
  $region8: #{tpu_custom_call.1} parent=0 // pred_region
    _
  $region9: #{tpu_custom_call.1} parent=0 // pred_fallthru
    _
  // Predicated region
  $region10: #{tpu_custom_call.1} parent=0 // pred_check
    _
  $region11: #{tpu_custom_call.1} parent=0 // pred_check_branch
    %19 = sbr.rel (0) target = $region13
  $region12: #{tpu_custom_call.1} parent=0 // pred_region
    _
  $region13: #{tpu_custom_call.1} parent=0 // pred_fallthru
    _
  // Predicated region
  $region14: #{tpu_custom_call.1} parent=0 // pred_check
    _
  $region15: #{tpu_custom_call.1} parent=0 // pred_check_branch
    %21 = sbr.rel (0) target = $region17
  $region16: #{tpu_custom_call.1} parent=0 // pred_region
    _
  $region17: #{tpu_custom_call.1} parent=0 // pred_fallthru
    _
  // Predicated region
  $region18: #{tpu_custom_call.1} parent=0 // pred_check
    _
  $region19: #{tpu_custom_call.1} parent=0 // pred_check_branch
    %23 = sbr.rel (0) target = $region21
  $region20: #{tpu_custom_call.1} parent=0 // pred_region
    _
  $region21: #{tpu_custom_call.1} parent=0 // pred_fallthru
    _
  // Predicated region
  $region22: #{tpu_custom_call.1} parent=0 // pred_check
    _
  $region23: #{tpu_custom_call.1} parent=0 // pred_check_branch
    %25 = sbr.rel (0) target = $region25
  $region24: #{tpu_custom_call.1} parent=0 // pred_region
    _
  $region25: #{tpu_custom_call.1} parent=0 // pred_fallthru
    _
  %v26 = vld [vmem:[%s1] sm:$0xff]
  %v27 = vld [vmem:[%s1 + $0x8] sm:$0x7f]
  %v28 = vld [vmem:[%s0] sm:$0xff]
  %v29 = vld [vmem:[%s0 + $0x8] sm:$0xff]
  %v30 = vld [vmem:[%s0 + $0x10] sm:$0xff]
  %v31 = vld [vmem:[%s0 + $0x18] sm:$0xff]
  %v32 = vld [vmem:[%s2] sm:$0xff]
  %v33 = vld [vmem:[%s2 + $0x8] sm:$0x7f]
  %35 = vset.pattern.permute.xlu0 0
  %36 = vperm.xlu0 %35, %v32
  %v37 = vpop.permute.xlu0 %36
  %40 = vset.pattern.permute.xlu0 0
  %41 = vperm.xlu0 %40, %v33
  %v42 = vpop.permute.xlu0 %41
  %vm44 = vcmask 261120
  %v46 = vsel %vm44, %v26, 0
  %v49 = vsel %vm44, %v27, 0
  %51 = vmatprep.subr.mxu0 0.0
  %52 = vmatpush1.msra.mxu0 0.0
  %53 = vmatprep.subr.mxu0 0.0
  %54 = vmatpush1.msra.mxu0 0.0
  %55 = vmatprep.subr.mxu0 0.0
  %56 = vmatpush1.msra.mxu0 0.0
  %57 = vmatprep.subr.mxu0 0.0
  %58 = vmatpush1.msra.mxu0 0.0
  %59 = vmatprep.subr.mxu0 0.0
  %60 = vmatpush1.msra.mxu0 0.0
  %61 = vmatprep.subr.mxu0 0.0
  %62 = vmatpush1.msra.mxu0 0.0
  %63 = vmatprep.subr.mxu0 0.0
  %64 = vmatpush1.msra.mxu0 0.0
  %65 = vmatprep.subr.mxu0 0.0
  %66 = vmatpush1.msra.mxu0 0.0
  %67 = vmatprep.subr.mxu0 0.0
  %68 = vmatpush1.msra.mxu0 0.0
  %69 = vmatprep.subr.mxu0 0.0
  %70 = vmatpush1.msra.mxu0 0.0
  %71 = vmatprep.subr.mxu0 0.0
  %72 = vmatpush1.msra.mxu0 0.0
  %73 = vmatprep.subr.mxu0 0.0
  %74 = vmatpush1.msra.mxu0 0.0
  %75 = vmatprep.subr.mxu0 0.0
  %76 = vmatpush1.msra.mxu0 %v31
  %77 = vmatprep.subr.mxu0 0.0
  %78 = vmatpush1.msra.mxu0 %v30
  %79 = vmatprep.subr.mxu0 0.0
  %80 = vmatpush1.msra.mxu0 %v29
  %81 = vmatprep.subr.mxu0 0.0
  %82 = vmatpush1.msra.mxu0 %v28
  %83 = vmatprep.subr.mxu0 0.0
  %84 = vmatpush2.msra.mxu0 0.0
  %85 = vmatprep.subr.mxu0 0.0
  %86 = vmatpush2.msra.mxu0 0.0
  %87 = vmatprep.subr.mxu0 0.0
  %88 = vmatpush2.msra.mxu0 0.0
  %89 = vmatprep.subr.mxu0 0.0
  %90 = vmatpush2.msra.mxu0 0.0
  %91 = vmatprep.subr.mxu0 0.0
  %92 = vmatpush2.msra.mxu0 0.0
  %93 = vmatprep.subr.mxu0 0.0
  %94 = vmatpush2.msra.mxu0 0.0
  %95 = vmatprep.subr.mxu0 0.0
  %96 = vmatpush2.msra.mxu0 0.0
  %97 = vmatprep.subr.mxu0 0.0
  %98 = vmatpush2.msra.mxu0 0.0
  %99 = vmatprep.subr.mxu0 0.0
  %100 = vmatpush2.msra.mxu0 0.0
  %101 = vmatprep.subr.mxu0 0.0
  %102 = vmatpush2.msra.mxu0 0.0
  %103 = vmatprep.subr.mxu0 0.0
  %104 = vmatpush2.msra.mxu0 0.0
  %105 = vmatprep.subr.mxu0 0.0
  %106 = vmatpush2.msra.mxu0 0.0
  %107 = vmatprep.subr.mxu0 0.0
  %108 = vmatpush2.msra.mxu0 0.0
  %109 = vmatprep.subr.mxu0 0.0
  %110 = vmatpush2.msra.mxu0 0.0
  %111 = vmatprep.subr.mxu0 0.0
  %112 = vmatpush2.msra.mxu0 0.0
  %113 = vmatprep.subr.mxu0 0.0
  %114 = vmatpush2.msra.mxu0 0.0
  %115 = vmatprep.mubr.f32.mxu0 0.0
  %116 = vmatmul.mubr.f32.gmra.mxu0 %v46
  %v117 = vpop.f32.mrf.mxu0
  %v118 = vadd.f32 %v37, %v117
  %v119 = vpop.f32.mrf.mxu0
  %120 = vmatprep.mubr.f32.mxu0 0.0
  %121 = vmatmul.mubr.f32.gmra.mxu0 %v49
  %v122 = vpop.f32.mrf.mxu0
  %v123 = vadd.f32 %v42, %v122
  %v124 = vpop.f32.mrf.mxu0
  %125 = vdwg.mxu0
  %vm126 = vcmask 15360
  %v127 = vsel %vm126, %v118, -inf
  %vm128 = vcmask 14336
  %v129 = vsel %vm128, %v123, -inf
  %v130 = vmax.f32 %v127, %v129
  %v131 = vrot.slane %v130, 4
  %v132 = vmax.f32 %v130, %v131
  %v133 = vrot.slane %v132, 2
  %v134 = vmax.f32 %v132, %v133
  %v135 = vrot.slane %v134, 1
  %v136 = vmax.f32 %v134, %v135
  %v137 = vsub.f32 %v118, %v136
  %v138 = vsub.f32 %v123, %v136
  %v139 = vmul.f32 %v137, 1.442695
  %v140 = vpow.pop %v139
  %v141 = vmul.f32 %v138, 1.442695
  %v142 = vpow.pop %v141
  %v143 = vsel %vm126, %v140, 0.0
  %v144 = vsel %vm128, %v142, 0.0
  %v145 = vadd.f32 %v143, %v144
  %v146 = vrot.slane %v145, 4
  %v147 = vadd.f32 %v145, %v146
  %v148 = vrot.slane %v147, 2
  %v149 = vadd.f32 %v147, %v148
  %v150 = vrot.slane %v149, 1
  %v151 = vadd.f32 %v149, %v150
  %v152 = vrcp.pop %v151
  %v153 = vmul.f32 %v140, %v152
  %v154 = vmul.f32 %v142, %v152
  %vm155 = vcmask 8192
  %156 = vst.msk [vmem:[%s8] sm:$0x1] %vm155, 0.0
  %157 = vst.msk [vmem:[%s8 + $0x1] sm:$0xff] %vm126, %v153
  %158 = vst.msk [vmem:[%s8 + $0x9] sm:$0x7f] %vm128, %v154
  %v159 = vld [vmem:[%s3] sm:$0xff]
  %v160 = vld [vmem:[%s3 + $0x8] sm:$0xff]
  %vm161 = vcmask 121856
  %v163 = vsel %vm161, %v159, 0
  %v166 = vsel %vm161, %v160, 0
  %vm168 = vcmask 1046528
  %v170 = vsel %vm168, %v154, 0
  %172 = vmatprep.subr.mxu0 0.0
  %173 = vmatpush1.msra.mxu0 0.0
  %174 = vmatprep.subr.mxu0 0.0
  %175 = vmatpush1.msra.mxu0 0.0
  %176 = vmatprep.subr.mxu0 0.0
  %177 = vmatpush1.msra.mxu0 0.0
  %178 = vmatprep.subr.mxu0 0.0
  %179 = vmatpush1.msra.mxu0 0.0
  %180 = vmatprep.subr.mxu0 0.0
  %181 = vmatpush1.msra.mxu0 0.0
  %182 = vmatprep.subr.mxu0 0.0
  %183 = vmatpush1.msra.mxu0 0.0
  %184 = vmatprep.subr.mxu0 0.0
  %185 = vmatpush1.msra.mxu0 0.0
  %186 = vmatprep.subr.mxu0 0.0
  %187 = vmatpush1.msra.mxu0 0.0
  %188 = vmatprep.subr.mxu0 0.0
  %189 = vmatpush1.msra.mxu0 0.0
  %190 = vmatprep.subr.mxu0 0.0
  %191 = vmatpush1.msra.mxu0 0.0
  %192 = vmatprep.subr.mxu0 0.0
  %193 = vmatpush1.msra.mxu0 0.0
  %194 = vmatprep.subr.mxu0 0.0
  %195 = vmatpush1.msra.mxu0 0.0
  %196 = vmatprep.subr.mxu0 0.0
  %197 = vmatpush1.msra.mxu0 0.0
  %198 = vmatprep.subr.mxu0 0.0
  %199 = vmatpush1.msra.mxu0 0.0
  %200 = vmatprep.subr.mxu0 0.0
  %201 = vmatpush1.msra.mxu0 %v170
  %202 = vmatprep.subr.mxu0 0.0
  %203 = vmatpush1.msra.mxu0 %v153
  %204 = vmatprep.subr.mxu0 0.0
  %205 = vmatpush2.msra.mxu0 0.0
  %206 = vmatprep.subr.mxu0 0.0
  %207 = vmatpush2.msra.mxu0 0.0
  %208 = vmatprep.subr.mxu0 0.0
  %209 = vmatpush2.msra.mxu0 0.0
  %210 = vmatprep.subr.mxu0 0.0
  %211 = vmatpush2.msra.mxu0 0.0
  %212 = vmatprep.subr.mxu0 0.0
  %213 = vmatpush2.msra.mxu0 0.0
  %214 = vmatprep.subr.mxu0 0.0
  %215 = vmatpush2.msra.mxu0 0.0
  %216 = vmatprep.subr.mxu0 0.0
  %217 = vmatpush2.msra.mxu0 0.0
  %218 = vmatprep.subr.mxu0 0.0
  %219 = vmatpush2.msra.mxu0 0.0
  %220 = vmatprep.subr.mxu0 0.0
  %221 = vmatpush2.msra.mxu0 0.0
  %222 = vmatprep.subr.mxu0 0.0
  %223 = vmatpush2.msra.mxu0 0.0
  %224 = vmatprep.subr.mxu0 0.0
  %225 = vmatpush2.msra.mxu0 0.0
  %226 = vmatprep.subr.mxu0 0.0
  %227 = vmatpush2.msra.mxu0 0.0
  %228 = vmatprep.subr.mxu0 0.0
  %229 = vmatpush2.msra.mxu0 0.0
  %230 = vmatprep.subr.mxu0 0.0
  %231 = vmatpush2.msra.mxu0 0.0
  %232 = vmatprep.subr.mxu0 0.0
  %233 = vmatpush2.msra.mxu0 0.0
  %234 = vmatprep.subr.mxu0 0.0
  %235 = vmatpush2.msra.mxu0 0.0
  %236 = vmatprep.mubr.f32.mxu0 0.0
  %237 = vmatmul.mubr.f32.gmra.mxu0 %v163
  %v238 = vpop.f32.mrf.mxu0
  %v239 = vadd.f32 0.0, %v238
  %v240 = vpop.f32.mrf.mxu0
  %241 = vmatprep.mubr.f32.mxu0 0.0
  %242 = vmatmul.mubr.f32.gmra.mxu0 %v166
  %v243 = vpop.f32.mrf.mxu0
  %v244 = vadd.f32 0.0, %v243
  %v245 = vpop.f32.mrf.mxu0
  %246 = vdwg.mxu0
  %v247 = vmax.f32 %v239, 0.0
  %v248 = vmax.f32 %v244, 0.0
  %v249 = vmin.f32 %v247, 1.0
  %v250 = vmin.f32 %v248, 1.0
  %251 = vst.msk [vmem:[%s7] sm:$0xff] %vm126, %v249
  %252 = vst.msk [vmem:[%s7 + $0x8] sm:$0xff] %vm126, %v250
  %v253 = vadd.f32 %v249, 1e-07
  %v254 = vadd.f32 %v250, 1e-07
  %v255 = vsub.f32 1.0, %v249
  %v256 = vsub.f32 1.0, %v250
  %v257 = vadd.f32 %v255, 1e-07
  %v258 = vadd.f32 %v256, 1e-07
  %v259 = vmul.f32 %v257, %v257
  %v260 = vmul.f32 %v258, %v258
  %v261 = vmul.f32 %v259, %v257
  %v262 = vmul.f32 %v260, %v258
  %v263 = vmul.f32 %v261, %v257
  %v264 = vmul.f32 %v262, %v258
  %v265 = vmul.f32 %v263, %v257
  %v266 = vmul.f32 %v264, %v258
  %v267 = vmul.f32 %v265, %v257
  %v268 = vmul.f32 %v266, %v258
  %v269 = vmul.f32 %v267, %v257
  %v270 = vmul.f32 %v268, %v258
  %v271 = vld [vmem:[%s5] sm:$0xff]
  %v272 = vld [vmem:[%s4] sm:$0xff]
  %v273 = vld [vmem:[%s4 + $0x8] sm:$0xff]
  %v274 = vlaneseq
  %v275 = vshrl.u32 %v274, 7
  %v276 = vsub.s32 0, %v275
  %v277 = vrot.slane %v271, %v276
  %v278 = vmul.f32 %v269, %v277
  %v279 = vmul.f32 %v270, %v277
  %v280 = vadd.f32 %v278, 0.0
  %v281 = vadd.f32 %v279, 0.0
  %v282 = vlaneseq
  %v283 = vshrl.u32 %v282, 7
  %v284 = vsub.s32 0, %v283
  %v285 = vrot.slane %v272, %v284
  %v286 = vmul.f32 %v278, %v285
  %v287 = vmul.f32 %v279, %v285
  %v288 = vadd.f32 %v286, 0.0
  %v289 = vadd.f32 %v287, 0.0
  %v290 = vlaneseq
  %v291 = vshrl.u32 %v290, 7
  %v292 = vsub.s32 0, %v291
  %v293 = vrot.slane %v273, %v292
  %v294 = vmul.f32 %v278, %v293
  %v295 = vmul.f32 %v279, %v293
  %v296 = vadd.f32 %v294, 0.0
  %v297 = vadd.f32 %v295, 0.0
  %v298 = vmul.f32 %v253, 7.0
  %v299 = vmul.f32 %v254, 7.0
  %v300 = vmul.f32 %v298, %v267
  %v301 = vmul.f32 %v299, %v268
  %v302 = vlaneseq
  %v303 = vshrl.u32 %v302, 7
  %v304 = vsub.s32 1, %v303
  %v305 = vrot.slane %v271, %v304
  %v306 = vmul.f32 %v300, %v305
  %v307 = vmul.f32 %v301, %v305
  %v308 = vadd.f32 %v280, %v306
  %v309 = vadd.f32 %v281, %v307
  %v310 = vlaneseq
  %v311 = vshrl.u32 %v310, 7
  %v312 = vsub.s32 1, %v311
  %v313 = vrot.slane %v272, %v312
  %v314 = vmul.f32 %v306, %v313
  %v315 = vmul.f32 %v307, %v313
  %v316 = vadd.f32 %v288, %v314
  %v317 = vadd.f32 %v289, %v315
  %v318 = vlaneseq
  %v319 = vshrl.u32 %v318, 7
  %v320 = vsub.s32 1, %v319
  %v321 = vrot.slane %v273, %v320
  %v322 = vmul.f32 %v306, %v321
  %v323 = vmul.f32 %v307, %v321
  %v324 = vadd.f32 %v296, %v322
  %v325 = vadd.f32 %v297, %v323
  %v326 = vmul.f32 %v253, %v253
  %v327 = vmul.f32 %v254, %v254
  %v328 = vmul.f32 %v326, 20.999998
  %v329 = vmul.f32 %v327, 20.999998
  %v330 = vmul.f32 %v328, %v265
  %v331 = vmul.f32 %v329, %v266
  %v332 = vlaneseq
  %v333 = vshrl.u32 %v332, 7
  %v334 = vsub.s32 2, %v333
  %v335 = vrot.slane %v271, %v334
  %v336 = vmul.f32 %v330, %v335
  %v337 = vmul.f32 %v331, %v335
  %v338 = vadd.f32 %v308, %v336
  %v339 = vadd.f32 %v309, %v337
  %v340 = vlaneseq
  %v341 = vshrl.u32 %v340, 7
  %v342 = vsub.s32 2, %v341
  %v343 = vrot.slane %v272, %v342
  %v344 = vmul.f32 %v336, %v343
  %v345 = vmul.f32 %v337, %v343
  %v346 = vadd.f32 %v316, %v344
  %v347 = vadd.f32 %v317, %v345
  %v348 = vlaneseq
  %v349 = vshrl.u32 %v348, 7
  %v350 = vsub.s32 2, %v349
  %v351 = vrot.slane %v273, %v350
  %v352 = vmul.f32 %v336, %v351
  %v353 = vmul.f32 %v337, %v351
  %v354 = vadd.f32 %v324, %v352
  %v355 = vadd.f32 %v325, %v353
  %v356 = vmul.f32 %v326, %v253
  %v357 = vmul.f32 %v327, %v254
  %v358 = vmul.f32 %v356, 34.999996
  %v359 = vmul.f32 %v357, 34.999996
  %v360 = vmul.f32 %v358, %v263
  %v361 = vmul.f32 %v359, %v264
  %v362 = vlaneseq
  %v363 = vshrl.u32 %v362, 7
  %v364 = vsub.s32 3, %v363
  %v365 = vrot.slane %v271, %v364
  %v366 = vmul.f32 %v360, %v365
  %v367 = vmul.f32 %v361, %v365
  %v368 = vadd.f32 %v338, %v366
  %v369 = vadd.f32 %v339, %v367
  %v370 = vlaneseq
  %v371 = vshrl.u32 %v370, 7
  %v372 = vsub.s32 3, %v371
  %v373 = vrot.slane %v272, %v372
  %v374 = vmul.f32 %v366, %v373
  %v375 = vmul.f32 %v367, %v373
  %v376 = vadd.f32 %v346, %v374
  %v377 = vadd.f32 %v347, %v375
  %v378 = vlaneseq
  %v379 = vshrl.u32 %v378, 7
  %v380 = vsub.s32 3, %v379
  %v381 = vrot.slane %v273, %v380
  %v382 = vmul.f32 %v366, %v381
  %v383 = vmul.f32 %v367, %v381
  %v384 = vadd.f32 %v354, %v382
  %v385 = vadd.f32 %v355, %v383
  %v386 = vmul.f32 %v356, %v253
  %v387 = vmul.f32 %v357, %v254
  %v388 = vmul.f32 %v386, 34.999996
  %v389 = vmul.f32 %v387, 34.999996
  %v390 = vmul.f32 %v388, %v261
  %v391 = vmul.f32 %v389, %v262
  %v392 = vlaneseq
  %v393 = vshrl.u32 %v392, 7
  %v394 = vsub.s32 4, %v393
  %v395 = vrot.slane %v271, %v394
  %v396 = vmul.f32 %v390, %v395
  %v397 = vmul.f32 %v391, %v395
  %v398 = vadd.f32 %v368, %v396
  %v399 = vadd.f32 %v369, %v397
  %v400 = vlaneseq
  %v401 = vshrl.u32 %v400, 7
  %v402 = vsub.s32 4, %v401
  %v403 = vrot.slane %v272, %v402
  %v404 = vmul.f32 %v396, %v403
  %v405 = vmul.f32 %v397, %v403
  %v406 = vadd.f32 %v376, %v404
  %v407 = vadd.f32 %v377, %v405
  %v408 = vlaneseq
  %v409 = vshrl.u32 %v408, 7
  %v410 = vsub.s32 4, %v409
  %v411 = vrot.slane %v273, %v410
  %v412 = vmul.f32 %v396, %v411
  %v413 = vmul.f32 %v397, %v411
  %v414 = vadd.f32 %v384, %v412
  %v415 = vadd.f32 %v385, %v413
  %v416 = vmul.f32 %v386, %v253
  %v417 = vmul.f32 %v387, %v254
  %v418 = vmul.f32 %v416, 20.999998
  %v419 = vmul.f32 %v417, 20.999998
  %v420 = vmul.f32 %v418, %v259
  %v421 = vmul.f32 %v419, %v260
  %v422 = vlaneseq
  %v423 = vshrl.u32 %v422, 7
  %v424 = vsub.s32 5, %v423
  %v425 = vrot.slane %v271, %v424
  %v426 = vmul.f32 %v420, %v425
  %v427 = vmul.f32 %v421, %v425
  %v428 = vadd.f32 %v398, %v426
  %v429 = vadd.f32 %v399, %v427
  %v430 = vlaneseq
  %v431 = vshrl.u32 %v430, 7
  %v432 = vsub.s32 5, %v431
  %v433 = vrot.slane %v272, %v432
  %v434 = vmul.f32 %v426, %v433
  %v435 = vmul.f32 %v427, %v433
  %v436 = vadd.f32 %v406, %v434
  %v437 = vadd.f32 %v407, %v435
  %v438 = vlaneseq
  %v439 = vshrl.u32 %v438, 7
  %v440 = vsub.s32 5, %v439
  %v441 = vrot.slane %v273, %v440
  %v442 = vmul.f32 %v426, %v441
  %v443 = vmul.f32 %v427, %v441
  %v444 = vadd.f32 %v414, %v442
  %v445 = vadd.f32 %v415, %v443
  %v446 = vmul.f32 %v416, %v253
  %v447 = vmul.f32 %v417, %v254
  %v448 = vmul.f32 %v446, 7.0
  %v449 = vmul.f32 %v447, 7.0
  %v450 = vmul.f32 %v448, %v257
  %v451 = vmul.f32 %v449, %v258
  %v452 = vlaneseq
  %v453 = vshrl.u32 %v452, 7
  %v454 = vsub.s32 6, %v453
  %v455 = vrot.slane %v271, %v454
  %v456 = vmul.f32 %v450, %v455
  %v457 = vmul.f32 %v451, %v455
  %v458 = vadd.f32 %v428, %v456
  %v459 = vadd.f32 %v429, %v457
  %v460 = vlaneseq
  %v461 = vshrl.u32 %v460, 7
  %v462 = vsub.s32 6, %v461
  %v463 = vrot.slane %v272, %v462
  %v464 = vmul.f32 %v456, %v463
  %v465 = vmul.f32 %v457, %v463
  %v466 = vadd.f32 %v436, %v464
  %v467 = vadd.f32 %v437, %v465
  %v468 = vlaneseq
  %v469 = vshrl.u32 %v468, 7
  %v470 = vsub.s32 6, %v469
  %v471 = vrot.slane %v273, %v470
  %v472 = vmul.f32 %v456, %v471
  %v473 = vmul.f32 %v457, %v471
  %v474 = vadd.f32 %v444, %v472
  %v475 = vadd.f32 %v445, %v473
  %v476 = vmul.f32 %v446, %v253
  %v477 = vmul.f32 %v447, %v254
  %v478 = vlaneseq
  %v479 = vshrl.u32 %v478, 7
  %v480 = vsub.s32 7, %v479
  %v481 = vrot.slane %v271, %v480
  %v482 = vmul.f32 %v476, %v481
  %v483 = vmul.f32 %v477, %v481
  %v484 = vadd.f32 %v458, %v482
  %v485 = vadd.f32 %v459, %v483
  %v486 = vlaneseq
  %v487 = vshrl.u32 %v486, 7
  %v488 = vsub.s32 7, %v487
  %v489 = vrot.slane %v272, %v488
  %v490 = vmul.f32 %v482, %v489
  %v491 = vmul.f32 %v483, %v489
  %v492 = vadd.f32 %v466, %v490
  %v493 = vadd.f32 %v467, %v491
  %v494 = vlaneseq
  %v495 = vshrl.u32 %v494, 7
  %v496 = vsub.s32 7, %v495
  %v497 = vrot.slane %v273, %v496
  %v498 = vmul.f32 %v482, %v497
  %v499 = vmul.f32 %v483, %v497
  %v500 = vadd.f32 %v474, %v498
  %v501 = vadd.f32 %v475, %v499
  %v502 = vrcp.pop %v484
  %v503 = vrcp.pop %v485
  %v504 = vmul.f32 %v492, %v502
  %v505 = vmul.f32 %v493, %v503
  %506 = vst.msk [vmem:[%s6] sm:$0xff] %vm126, %v504
  %507 = vst.msk [vmem:[%s6 + $0x8] sm:$0xff] %vm126, %v505
  %v508 = vmul.f32 %v500, %v502
  %v509 = vmul.f32 %v501, %v503
  %510 = vst.msk [vmem:[%s6 + $0x10] sm:$0xff] %vm126, %v508
  %511 = vst.msk [vmem:[%s6 + $0x18] sm:$0xff] %vm126, %v509
  // Predicated region
  $region26: #{tpu_custom_call.1} parent=0 // pred_check
    _
  $region27: #{tpu_custom_call.1} parent=0 // pred_check_branch
    %513 = sbr.rel (0) target = $region29
  $region28: #{tpu_custom_call.1} parent=0 // pred_region
    _
  $region29: #{tpu_custom_call.1} parent=0 // pred_fallthru
    _
  // Predicated region
  $region30: #{tpu_custom_call.1} parent=0 // pred_check
    _
  $region31: #{tpu_custom_call.1} parent=0 // pred_check_branch
    %515 = sbr.rel (0) target = $region33
  $region32: #{tpu_custom_call.1} parent=0 // pred_region
    _
  $region33: #{tpu_custom_call.1} parent=0 // pred_fallthru
    _
  // Predicated region
  $region34: #{tpu_custom_call.1} parent=0 // pred_check
    _
  $region35: #{tpu_custom_call.1} parent=0 // pred_check_branch
    %517 = sbr.rel (0) target = $region37
  $region36: #{tpu_custom_call.1} parent=0 // pred_region
    _
  $region37: #{tpu_custom_call.1} parent=0 // pred_fallthru
    _
  // Predicated region
  $region38: #{tpu_custom_call.1} parent=0 // pred_check
    _
  $region39: #{tpu_custom_call.1} parent=0 // pred_check_branch
    %519 = sbr.rel (0) target = $region41
  $region40: #{tpu_custom_call.1} parent=0 // pred_region
    _
  $region41: #{tpu_custom_call.1} parent=0 // pred_fallthru
    _
  // Predicated region
  $region42: #{tpu_custom_call.1} parent=0 // pred_check
    _
  $region43: #{tpu_custom_call.1} parent=0 // pred_check_branch
    %521 = sbr.rel (0) target = $region45
  $region44: #{tpu_custom_call.1} parent=0 // pred_region
    _
  $region45: #{tpu_custom_call.1} parent=0 // pred_fallthru
    _
  // Predicated region
  $region46: #{tpu_custom_call.1} parent=0 // pred_check
    _
  $region47: #{tpu_custom_call.1} parent=0 // pred_check_branch
    %523 = sbr.rel (0) target = $region49
  $region48: #{tpu_custom_call.1} parent=0 // pred_region
    _
  $region49: #{tpu_custom_call.1} parent=0 // pred_fallthru
    _

</llo_original>
